<compile_context>
chip_gen: v7x
topology: tpu7x:2x2x1
jax: 0.10.0
libtpu: 0.0.40
codegen_flags: <defaults>
</compile_context>

<pallas_src>
import functools

import jax
import jax.numpy as jnp
from jax import lax
from jax.experimental import pallas as pl
from jax.experimental.pallas import tpu as pltpu


def _wrt_kernel(f1_ref, f2_ref, sq1_ref, sq2_ref, lab_col_ref, lab_row_ref,
                loss_ref, *, approx_recip):
    f1 = f1_ref[...]                        # (tm, D) query rows, native dtype -> MXU
    f2 = f2_ref[...]                        # (N, D)  full key slab (resident)
    sq1 = sq1_ref[...]                      # (tm, 1) ||f1||^2, precomputed in wrapper
    sq2 = sq2_ref[...]                      # (1, N)  ||f2||^2, precomputed in wrapper
    is_pos = lab_col_ref[...] == lab_row_ref[...]       # (tm, N) bool, never cast to float

    # Gram tile on the MXU; contract the feature axis of both operands (no transpose).
    gram = lax.dot_general(f1, f2, (((1,), (1,)), ((), ())),
                           preferred_element_type=jnp.float32)         # (tm, N)
    dist = jnp.sqrt(jnp.clip(sq1 + sq2 - 2.0 * gram, 1e-12, None))     # (tm, N)

    dist_ap = jnp.where(is_pos, dist, 0.0)      # (tm, N)
    dist_an = dist - dist_ap                    # == where(is_neg, dist, 0); one VALU sub

    # Row sums offloaded to the otherwise-idle MXU (matvec against a ones column);
    # only the max/min reductions stay on the VALU/XLU path.
    ones_col = jnp.ones((f2.shape[0], 1), jnp.float32)

    def rowsum(x):                              # (tm, N) -> (tm, 1)
        return lax.dot_general(x, ones_col, (((1,), (0,)), ((), ())),
                               preferred_element_type=jnp.float32)

    # --- weighted softmax over positives: softmax_weights(dist_ap, is_pos)
    # dist_ap is already masked, so max(dist_ap * is_pos) == max(dist_ap).
    max_p = jnp.max(dist_ap, axis=1, keepdims=True)                    # (tm, 1)
    e_p = jnp.where(is_pos, jnp.exp(dist_ap - max_p), 0.0)             # one exp, reused
    z_p = rowsum(e_p) + 1e-6
    # Fold normalization: sum(dist_ap * W) == sum(dist * e_p) / Z (e_p zero off-mask).
    furthest_positive = rowsum(dist * e_p) * pl.reciprocal(z_p, approx=approx_recip)

    # --- weighted softmax over negatives: softmax_weights(-dist_an, is_neg)
    # max((-dist_an) * is_neg) == max(-dist_an) == -min(dist_an) (dist_an masked, >= 0),
    # so the shifted exponent is exp(min_n - dist_an) with no extra negation tile.
    min_n = jnp.min(dist_an, axis=1, keepdims=True)                    # (tm, 1)
    e_n = jnp.where(is_pos, 0.0, jnp.exp(min_n - dist_an))
    z_n = rowsum(e_n) + 1e-6
    closest_negative = rowsum(dist * e_n) * pl.reciprocal(z_n, approx=approx_recip)

    # SoftMarginLoss with target y = 1, per row: log(1 + exp(-(cn - fp))),
    # written in the overflow-safe softplus form (identical value).
    x = closest_negative - furthest_positive
    loss_ref[...] = jnp.maximum(-x, 0.0) + jnp.log1p(jnp.exp(-jnp.abs(x)))   # (tm, 1)


def _vmem_limit_bytes():
    """Scoped-VMEM limit for the kernel, derived from the chip when possible."""
    cap = 64 << 20                      # conservative fallback (v7x per-TC physical)
    try:
        info = pltpu.get_tpu_info()
        cap = int(getattr(info, "vmem_capacity_bytes", cap))
    except Exception:
        pass
    # Leave headroom under physical; still well above the 16/32 MiB scoped defaults.
    return min(int(cap * 0.85), 110 << 20)


def _pick_block_rows(n, d, itemsize, vmem_limit):
    """Largest row-block that keeps the working set within ~75% of the VMEM limit."""
    budget = int(vmem_limit * 0.75)
    # Resident, single-buffered constants: key slab + ||f2||^2 row + label row.
    fixed = n * d * itemsize + 2 * n * 4
    # Per query row: double-buffered (tm,D) slab + small (tm,1) cols/out + ~8 live (tm,N) f32 temps.
    per_row = 2 * d * itemsize + 24 + 8 * n * 4
    candidates = [t for t in (256, 128, 64, 32, 16, 8) if n % t == 0]
    for tm in candidates:
        if fixed + tm * per_row <= budget:
            return tm
    if candidates:
        return candidates[-1]   # over budget even at tm=8 -> see streaming TODO above
    return n                    # small / ragged N: single block spanning the row dim


def weighted_regularized_triplet(features1, features2, labels, block_rows=None,
                                 approx_recip=True):
    """features1, features2: (N, D) float; labels: (N,) int -> scalar f32 loss."""
    n, d = features1.shape
    vmem_limit = _vmem_limit_bytes()
    itemsize = jnp.dtype(features1.dtype).itemsize
    tm = (_pick_block_rows(n, d, itemsize, vmem_limit)
          if block_rows is None else block_rows)
    assert n % tm == 0, (n, tm)

    # Precompute both squared norms in the wrapper (trivial fused XLA ops, done once).
    f1_f32 = features1.astype(jnp.float32)
    f2_f32 = features2.astype(jnp.float32)
    sq1_col = jnp.sum(f1_f32 * f1_f32, axis=1, keepdims=True)           # (n, 1)
    sq2_row = jnp.sum(f2_f32 * f2_f32, axis=1).reshape(1, n)            # (1, n)
    lab_col = labels.reshape(n, 1).astype(jnp.int32)
    lab_row = labels.reshape(1, n).astype(jnp.int32)

    kernel = functools.partial(_wrt_kernel, approx_recip=approx_recip)

    def call(single_buffer_consts):
        const_kw = ({"pipeline_mode": pl.Buffered(1)} if single_buffer_consts else {})
        return pl.pallas_call(
            kernel,
            out_shape=jax.ShapeDtypeStruct((n, 1), jnp.float32),
            grid_spec=pltpu.PrefetchScalarGridSpec(
                num_scalar_prefetch=0,
                grid=(n // tm,),
                in_specs=[
                    pl.BlockSpec((tm, d), lambda i: (i, 0)),              # query rows
                    pl.BlockSpec((n, d), lambda i: (0, 0), **const_kw),   # key slab (fetched once)
                    pl.BlockSpec((tm, 1), lambda i: (i, 0)),              # ||f1||^2 column
                    pl.BlockSpec((1, n), lambda i: (0, 0), **const_kw),   # ||f2||^2 row
                    pl.BlockSpec((tm, 1), lambda i: (i, 0)),              # labels (column)
                    pl.BlockSpec((1, n), lambda i: (0, 0), **const_kw),   # labels (row)
                ],
                out_specs=pl.BlockSpec((tm, 1), lambda i: (i, 0)),
            ),
            compiler_params=pltpu.CompilerParams(
                dimension_semantics=("parallel",),   # row blocks independent -> megacore
                vmem_limit_bytes=vmem_limit,
            ),
        )(features1, features2, sq1_col, sq2_row, lab_col, lab_row)

    try:
        per_row = call(True)      # single-buffer the grid-constant operands (VMEM saver)
    except Exception:             # pragma: no cover - jax builds without pipeline_mode/Buffered
        per_row = call(False)

    # Two-stage reduction: per-row SoftMargin losses in-kernel, mean outside.
    return jnp.mean(per_row)


def _reference(features1, features2, labels):
    # Pure-JAX reference mirroring the PyTorch module exactly.
    def softmax_weights(dist, mask):
        max_v = jnp.max(dist * mask, axis=1, keepdims=True)
        diff = dist - max_v
        z = jnp.sum(jnp.exp(diff) * mask, axis=1, keepdims=True) + 1e-6
        return jnp.exp(diff) * mask / z

    n = features1.shape[0]
    f1 = features1.astype(jnp.float32)
    f2 = features2.astype(jnp.float32)
    sq1 = jnp.sum(f1 ** 2, axis=1, keepdims=True)
    sq2 = jnp.sum(f2 ** 2, axis=1, keepdims=True)
    dist = jnp.sqrt(jnp.clip(sq1 + sq2.T - 2.0 * f1 @ f2.T, 1e-12, None))
    lab = labels.reshape(n, 1)
    is_pos = (lab == lab.T).astype(jnp.float32)
    is_neg = 1.0 - is_pos
    dist_ap = dist * is_pos
    dist_an = dist * is_neg
    w_ap = softmax_weights(dist_ap, is_pos)
    w_an = softmax_weights(-dist_an, is_neg)
    fp = jnp.sum(dist_ap * w_ap, axis=1)
    cn = jnp.sum(dist_an * w_an, axis=1)
    return jnp.mean(jnp.log1p(jnp.exp(-(cn - fp))))


if __name__ == "__main__":
    key = jax.random.PRNGKey(0)
    k1, k2, k3, k4 = jax.random.split(key, 4)

    # Shipped problem size: batch_size = 8, feature dim = 32 (single block).
    N, D = 8, 32
    features1 = jax.random.normal(k1, (N, D), dtype=jnp.float32)
    features2 = jax.random.normal(k2, (N, D), dtype=jnp.float32)
    labels = jnp.array([0, 0, 1, 1, 2, 2, 3, 3], dtype=jnp.int32)
    ref = _reference(features1, features2, labels)

    # Exact-reciprocal path: tight numerical check against the reference.
    loss_exact = weighted_regularized_triplet(features1, features2, labels,
                                              approx_recip=False)
    jax.block_until_ready(loss_exact)
    assert jnp.allclose(loss_exact, ref, rtol=1e-5, atol=1e-5), (loss_exact, ref)

    # Default (approx EUP reciprocal) path: ~2^-12 rel. error on the per-row z only.
    loss_fast = weighted_regularized_triplet(features1, features2, labels)
    jax.block_until_ready(loss_fast)
    assert jnp.allclose(loss_fast, ref, rtol=1e-2, atol=1e-2), (loss_fast, ref)

    # Second check exercising the multi-block grid path (4 row blocks of 8).
    N2, D2 = 32, 32
    f1b = jax.random.normal(k3, (N2, D2), dtype=jnp.float32)
    f2b = jax.random.normal(k4, (N2, D2), dtype=jnp.float32)
    labels2 = jnp.arange(N2, dtype=jnp.int32) // 4
    ref2 = _reference(f1b, f2b, labels2)

    loss2_exact = weighted_regularized_triplet(f1b, f2b, labels2, block_rows=8,
                                               approx_recip=False)
    jax.block_until_ready(loss2_exact)
    assert jnp.allclose(loss2_exact, ref2, rtol=1e-5, atol=1e-5), (loss2_exact, ref2)

    loss2_fast = weighted_regularized_triplet(f1b, f2b, labels2, block_rows=8)
    jax.block_until_ready(loss2_fast)
    assert jnp.allclose(loss2_fast, ref2, rtol=1e-2, atol=1e-2), (loss2_fast, ref2)

    print("KERNEL_OK")
</pallas_src>

<mosaic_0001>
module attributes {stable_mosaic.version = 11 : i64} {
  func.func @_wrt_kernel(%arg0: i32, %arg1: memref<8x32xf32, #tpu.memory_space<vmem>>, %arg2: memref<8x32xf32, #tpu.memory_space<vmem>>, %arg3: memref<8x1xf32, #tpu.memory_space<vmem>>, %arg4: memref<1x8xf32, #tpu.memory_space<vmem>>, %arg5: memref<8x1xi32, #tpu.memory_space<vmem>>, %arg6: memref<1x8xi32, #tpu.memory_space<vmem>>, %arg7: memref<8x1xf32, #tpu.memory_space<vmem>>) attributes {dimension_semantics = [#tpu.dimension_semantics<parallel>], iteration_bounds = array<i64: 1>, scalar_prefetch = 0 : i64, scratch_operands = 0 : i64, tpu.core_type = #tpu.core_type<tc>, window_params = [{transform_indices = @transform_0, window_bounds = array<i64: 8, 32>}, {pipeline_mode = #tpu.pipeline_mode<synchronous>, transform_indices = @transform_1, window_bounds = array<i64: 8, 32>}, {transform_indices = @transform_2, window_bounds = array<i64: 8, 1>}, {pipeline_mode = #tpu.pipeline_mode<synchronous>, transform_indices = @transform_3, window_bounds = array<i64: 1, 8>}, {transform_indices = @transform_4, window_bounds = array<i64: 8, 1>}, {pipeline_mode = #tpu.pipeline_mode<synchronous>, transform_indices = @transform_5, window_bounds = array<i64: 1, 8>}, {transform_indices = @transform_6, window_bounds = array<i64: 8, 1>}]} {
    %c0 = arith.constant 0 : index
    %c0_0 = arith.constant 0 : index
    %0 = vector.load %arg1[%c0, %c0_0] : memref<8x32xf32, #tpu.memory_space<vmem>>, vector<8x32xf32>
    %c0_1 = arith.constant 0 : index
    %c0_2 = arith.constant 0 : index
    %1 = vector.load %arg2[%c0_1, %c0_2] : memref<8x32xf32, #tpu.memory_space<vmem>>, vector<8x32xf32>
    %c0_3 = arith.constant 0 : index
    %c0_4 = arith.constant 0 : index
    %2 = vector.load %arg3[%c0_3, %c0_4] : memref<8x1xf32, #tpu.memory_space<vmem>>, vector<8x1xf32>
    %c0_5 = arith.constant 0 : index
    %c0_6 = arith.constant 0 : index
    %3 = vector.load %arg4[%c0_5, %c0_6] : memref<1x8xf32, #tpu.memory_space<vmem>>, vector<1x8xf32>
    %c0_7 = arith.constant 0 : index
    %c0_8 = arith.constant 0 : index
    %4 = vector.load %arg5[%c0_7, %c0_8] : memref<8x1xi32, #tpu.memory_space<vmem>>, vector<8x1xi32>
    %c0_9 = arith.constant 0 : index
    %c0_10 = arith.constant 0 : index
    %5 = vector.load %arg6[%c0_9, %c0_10] : memref<1x8xi32, #tpu.memory_space<vmem>>, vector<1x8xi32>
    %6 = vector.broadcast %4 : vector<8x1xi32> to vector<8x8xi32>
    %7 = vector.broadcast %5 : vector<1x8xi32> to vector<8x8xi32>
    %8 = arith.cmpi eq, %6, %7 : vector<8x8xi32>
    %cst = arith.constant dense<0.000000e+00> : vector<8x8xf32>
    %9 = tpu.matmul %0, %1, %cst {dimension_numbers = #tpu.dot_dimension_numbers<[1], [1], [0], [0], [0, 0, 1, 0], [], []>} : vector<8x32xf32>, vector<8x32xf32>, vector<8x8xf32> -> vector<8x8xf32>
    %10 = vector.broadcast %2 : vector<8x1xf32> to vector<8x8xf32>
    %11 = vector.broadcast %3 : vector<1x8xf32> to vector<8x8xf32>
    %12 = arith.addf %10, %11 : vector<8x8xf32>
    %cst_11 = arith.constant 2.000000e+00 : f32
    %13 = vector.broadcast %cst_11 : f32 to vector<8x8xf32>
    %14 = arith.mulf %13, %9 : vector<8x8xf32>
    %15 = arith.subf %12, %14 : vector<8x8xf32>
    %cst_12 = arith.constant 9.99999996E-13 : f32
    %16 = vector.broadcast %cst_12 : f32 to vector<8x8xf32>
    %17 = arith.maximumf %16, %15 : vector<8x8xf32>
    %18 = math.sqrt %17 : vector<8x8xf32>
    %cst_13 = arith.constant 0.000000e+00 : f32
    %19 = vector.broadcast %cst_13 : f32 to vector<8x8xf32>
    %20 = arith.select %8, %18, %19 : vector<8x8xi1>, vector<8x8xf32>
    %21 = arith.subf %18, %20 : vector<8x8xf32>
    %cst_14 = arith.constant 1.000000e+00 : f32
    %22 = vector.broadcast %cst_14 : f32 to vector<8x1xf32>
    %cst_15 = arith.constant dense<0xFF800000> : vector<8xf32>
    %23 = vector.multi_reduction <maximumf>, %20, %cst_15 [1] : vector<8x8xf32> to vector<8xf32>
    %24 = vector.shape_cast %23 : vector<8xf32> to vector<8x1xf32>
    %25 = vector.broadcast %24 : vector<8x1xf32> to vector<8x8xf32>
    %26 = arith.subf %20, %25 : vector<8x8xf32>
    %27 = math.exp %26 : vector<8x8xf32>
    %cst_16 = arith.constant 0.000000e+00 : f32
    %28 = vector.broadcast %cst_16 : f32 to vector<8x8xf32>
    %29 = arith.select %8, %27, %28 : vector<8x8xi1>, vector<8x8xf32>
    %cst_17 = arith.constant dense<0.000000e+00> : vector<8x1xf32>
    %30 = tpu.matmul %29, %22, %cst_17 {dimension_numbers = #tpu.dot_dimension_numbers<[1], [0], [0], [1], [0, 0, 1, 1], [], []>} : vector<8x8xf32>, vector<8x1xf32>, vector<8x1xf32> -> vector<8x1xf32>
    %cst_18 = arith.constant 9.99999997E-7 : f32
    %31 = vector.broadcast %cst_18 : f32 to vector<8x1xf32>
    %32 = arith.addf %30, %31 : vector<8x1xf32>
    %33 = arith.mulf %18, %29 : vector<8x8xf32>
    %cst_19 = arith.constant dense<0.000000e+00> : vector<8x1xf32>
    %34 = tpu.matmul %33, %22, %cst_19 {dimension_numbers = #tpu.dot_dimension_numbers<[1], [0], [0], [1], [0, 0, 1, 1], [], []>} : vector<8x8xf32>, vector<8x1xf32>, vector<8x1xf32> -> vector<8x1xf32>
    %35 = tpu.reciprocal %32 : vector<8x1xf32> -> vector<8x1xf32>
    %36 = arith.mulf %34, %35 : vector<8x1xf32>
    %cst_20 = arith.constant dense<0x7F800000> : vector<8xf32>
    %37 = vector.multi_reduction <minimumf>, %21, %cst_20 [1] : vector<8x8xf32> to vector<8xf32>
    %38 = vector.shape_cast %37 : vector<8xf32> to vector<8x1xf32>
    %39 = vector.broadcast %38 : vector<8x1xf32> to vector<8x8xf32>
    %40 = arith.subf %39, %21 : vector<8x8xf32>
    %41 = math.exp %40 : vector<8x8xf32>
    %cst_21 = arith.constant 0.000000e+00 : f32
    %42 = vector.broadcast %cst_21 : f32 to vector<8x8xf32>
    %43 = arith.select %8, %42, %41 : vector<8x8xi1>, vector<8x8xf32>
    %cst_22 = arith.constant dense<0.000000e+00> : vector<8x1xf32>
    %44 = tpu.matmul %43, %22, %cst_22 {dimension_numbers = #tpu.dot_dimension_numbers<[1], [0], [0], [1], [0, 0, 1, 1], [], []>} : vector<8x8xf32>, vector<8x1xf32>, vector<8x1xf32> -> vector<8x1xf32>
    %cst_23 = arith.constant 9.99999997E-7 : f32
    %45 = vector.broadcast %cst_23 : f32 to vector<8x1xf32>
    %46 = arith.addf %44, %45 : vector<8x1xf32>
    %47 = arith.mulf %18, %43 : vector<8x8xf32>
    %cst_24 = arith.constant dense<0.000000e+00> : vector<8x1xf32>
    %48 = tpu.matmul %47, %22, %cst_24 {dimension_numbers = #tpu.dot_dimension_numbers<[1], [0], [0], [1], [0, 0, 1, 1], [], []>} : vector<8x8xf32>, vector<8x1xf32>, vector<8x1xf32> -> vector<8x1xf32>
    %49 = tpu.reciprocal %46 : vector<8x1xf32> -> vector<8x1xf32>
    %50 = arith.mulf %48, %49 : vector<8x1xf32>
    %51 = arith.subf %50, %36 : vector<8x1xf32>
    %cst_25 = arith.constant 0.000000e+00 : f32
    %52 = vector.broadcast %cst_25 : f32 to vector<8x1xf32>
    %53 = arith.subf %52, %51 : vector<8x1xf32>
    %cst_26 = arith.constant 0.000000e+00 : f32
    %54 = vector.broadcast %cst_26 : f32 to vector<8x1xf32>
    %55 = arith.maximumf %53, %54 : vector<8x1xf32>
    %56 = math.absf %51 : vector<8x1xf32>
    %cst_27 = arith.constant 0.000000e+00 : f32
    %57 = vector.broadcast %cst_27 : f32 to vector<8x1xf32>
    %58 = arith.subf %57, %56 : vector<8x1xf32>
    %59 = math.exp %58 : vector<8x1xf32>
    %60 = math.log1p %59 : vector<8x1xf32>
    %61 = arith.addf %55, %60 : vector<8x1xf32>
    %c0_28 = arith.constant 0 : index
    %c0_29 = arith.constant 0 : index
    %62 = vector.load %arg7[%c0_28, %c0_29] : memref<8x1xf32, #tpu.memory_space<vmem>>, vector<8x1xf32>
    tpu.vector_store %arg7[%c0_28, %c0_29], %61 {strides = array<i32>} : memref<8x1xf32, #tpu.memory_space<vmem>>, vector<8x1xf32>,
    return
  }
  func.func @transform_0(%arg0: i32) -> (i32, i32) {
    %c0_i32 = arith.constant 0 : i32
    %c0_i32_0 = arith.constant 0 : i32
    return %arg0, %c0_i32 : i32, i32
  }
  func.func @transform_1(%arg0: i32) -> (i32, i32) {
    %c0_i32 = arith.constant 0 : i32
    %c0_i32_0 = arith.constant 0 : i32
    %c0_i32_1 = arith.constant 0 : i32
    return %c0_i32, %c0_i32_0 : i32, i32
  }
  func.func @transform_2(%arg0: i32) -> (i32, i32) {
    %c0_i32 = arith.constant 0 : i32
    %c0_i32_0 = arith.constant 0 : i32
    return %arg0, %c0_i32 : i32, i32
  }
  func.func @transform_3(%arg0: i32) -> (i32, i32) {
    %c0_i32 = arith.constant 0 : i32
    %c0_i32_0 = arith.constant 0 : i32
    %c0_i32_1 = arith.constant 0 : i32
    return %c0_i32, %c0_i32_0 : i32, i32
  }
  func.func @transform_4(%arg0: i32) -> (i32, i32) {
    %c0_i32 = arith.constant 0 : i32
    %c0_i32_0 = arith.constant 0 : i32
    return %arg0, %c0_i32 : i32, i32
  }
  func.func @transform_5(%arg0: i32) -> (i32, i32) {
    %c0_i32 = arith.constant 0 : i32
    %c0_i32_0 = arith.constant 0 : i32
    %c0_i32_1 = arith.constant 0 : i32
    return %c0_i32, %c0_i32_0 : i32, i32
  }
  func.func @transform_6(%arg0: i32) -> (i32, i32) {
    %c0_i32 = arith.constant 0 : i32
    %c0_i32_0 = arith.constant 0 : i32
    return %arg0, %c0_i32 : i32, i32
  }
}

module attributes {stable_mosaic.version = 11 : i64} {
  func.func @_wrt_kernel(%arg0: i32, %arg1: memref<8x32xf32, #tpu.memory_space<vmem>>, %arg2: memref<8x32xf32, #tpu.memory_space<vmem>>, %arg3: memref<8x1xf32, #tpu.memory_space<vmem>>, %arg4: memref<1x8xf32, #tpu.memory_space<vmem>>, %arg5: memref<8x1xi32, #tpu.memory_space<vmem>>, %arg6: memref<1x8xi32, #tpu.memory_space<vmem>>, %arg7: memref<8x1xf32, #tpu.memory_space<vmem>>) attributes {dimension_semantics = [#tpu.dimension_semantics<parallel>], iteration_bounds = array<i64: 1>, scalar_prefetch = 0 : i64, scratch_operands = 0 : i64, tpu.core_type = #tpu.core_type<tc>, window_params = [{transform_indices = @transform_0, window_bounds = array<i64: 8, 32>}, {pipeline_mode = #tpu.pipeline_mode<synchronous>, transform_indices = @transform_1, window_bounds = array<i64: 8, 32>}, {transform_indices = @transform_2, window_bounds = array<i64: 8, 1>}, {pipeline_mode = #tpu.pipeline_mode<synchronous>, transform_indices = @transform_3, window_bounds = array<i64: 1, 8>}, {transform_indices = @transform_4, window_bounds = array<i64: 8, 1>}, {pipeline_mode = #tpu.pipeline_mode<synchronous>, transform_indices = @transform_5, window_bounds = array<i64: 1, 8>}, {transform_indices = @transform_6, window_bounds = array<i64: 8, 1>}]} {
    %c0 = arith.constant 0 : index
    %c0_0 = arith.constant 0 : index
    %0 = vector.load %arg1[%c0, %c0_0] : memref<8x32xf32, #tpu.memory_space<vmem>>, vector<8x32xf32>
    %c0_1 = arith.constant 0 : index
    %c0_2 = arith.constant 0 : index
    %1 = vector.load %arg2[%c0_1, %c0_2] : memref<8x32xf32, #tpu.memory_space<vmem>>, vector<8x32xf32>
    %c0_3 = arith.constant 0 : index
    %c0_4 = arith.constant 0 : index
    %2 = vector.load %arg3[%c0_3, %c0_4] : memref<8x1xf32, #tpu.memory_space<vmem>>, vector<8x1xf32>
    %c0_5 = arith.constant 0 : index
    %c0_6 = arith.constant 0 : index
    %3 = vector.load %arg4[%c0_5, %c0_6] : memref<1x8xf32, #tpu.memory_space<vmem>>, vector<1x8xf32>
    %c0_7 = arith.constant 0 : index
    %c0_8 = arith.constant 0 : index
    %4 = vector.load %arg5[%c0_7, %c0_8] : memref<8x1xi32, #tpu.memory_space<vmem>>, vector<8x1xi32>
    %c0_9 = arith.constant 0 : index
    %c0_10 = arith.constant 0 : index
    %5 = vector.load %arg6[%c0_9, %c0_10] : memref<1x8xi32, #tpu.memory_space<vmem>>, vector<1x8xi32>
    %6 = vector.broadcast %4 : vector<8x1xi32> to vector<8x8xi32>
    %7 = vector.broadcast %5 : vector<1x8xi32> to vector<8x8xi32>
    %8 = arith.cmpi eq, %6, %7 : vector<8x8xi32>
    %cst = arith.constant dense<0.000000e+00> : vector<8x8xf32>
    %9 = tpu.matmul %0, %1, %cst {dimension_numbers = #tpu.dot_dimension_numbers<[1], [1], [0], [0], [0, 0, 1, 0], [], []>} : vector<8x32xf32>, vector<8x32xf32>, vector<8x8xf32> -> vector<8x8xf32>
    %10 = vector.broadcast %2 : vector<8x1xf32> to vector<8x8xf32>
    %11 = vector.broadcast %3 : vector<1x8xf32> to vector<8x8xf32>
    %12 = arith.addf %10, %11 : vector<8x8xf32>
    %cst_11 = arith.constant 2.000000e+00 : f32
    %13 = vector.broadcast %cst_11 : f32 to vector<8x8xf32>
    %14 = arith.mulf %13, %9 : vector<8x8xf32>
    %15 = arith.subf %12, %14 : vector<8x8xf32>
    %cst_12 = arith.constant 9.99999996E-13 : f32
    %16 = vector.broadcast %cst_12 : f32 to vector<8x8xf32>
    %17 = arith.maximumf %16, %15 : vector<8x8xf32>
    %18 = math.sqrt %17 : vector<8x8xf32>
    %cst_13 = arith.constant 0.000000e+00 : f32
    %19 = vector.broadcast %cst_13 : f32 to vector<8x8xf32>
    %20 = arith.select %8, %18, %19 : vector<8x8xi1>, vector<8x8xf32>
    %21 = arith.subf %18, %20 : vector<8x8xf32>
    %cst_14 = arith.constant 1.000000e+00 : f32
    %22 = vector.broadcast %cst_14 : f32 to vector<8x1xf32>
    %cst_15 = arith.constant dense<0xFF800000> : vector<8xf32>
    %23 = vector.multi_reduction <maximumf>, %20, %cst_15 [1] : vector<8x8xf32> to vector<8xf32>
    %24 = vector.shape_cast %23 : vector<8xf32> to vector<8x1xf32>
    %25 = vector.broadcast %24 : vector<8x1xf32> to vector<8x8xf32>
    %26 = arith.subf %20, %25 : vector<8x8xf32>
    %27 = math.exp %26 : vector<8x8xf32>
    %cst_16 = arith.constant 0.000000e+00 : f32
    %28 = vector.broadcast %cst_16 : f32 to vector<8x8xf32>
    %29 = arith.select %8, %27, %28 : vector<8x8xi1>, vector<8x8xf32>
    %cst_17 = arith.constant dense<0.000000e+00> : vector<8x1xf32>
    %30 = tpu.matmul %29, %22, %cst_17 {dimension_numbers = #tpu.dot_dimension_numbers<[1], [0], [0], [1], [0, 0, 1, 1], [], []>} : vector<8x8xf32>, vector<8x1xf32>, vector<8x1xf32> -> vector<8x1xf32>
    %cst_18 = arith.constant 9.99999997E-7 : f32
    %31 = vector.broadcast %cst_18 : f32 to vector<8x1xf32>
    %32 = arith.addf %30, %31 : vector<8x1xf32>
    %33 = arith.mulf %18, %29 : vector<8x8xf32>
    %cst_19 = arith.constant dense<0.000000e+00> : vector<8x1xf32>
    %34 = tpu.matmul %33, %22, %cst_19 {dimension_numbers = #tpu.dot_dimension_numbers<[1], [0], [0], [1], [0, 0, 1, 1], [], []>} : vector<8x8xf32>, vector<8x1xf32>, vector<8x1xf32> -> vector<8x1xf32>
    %35 = tpu.reciprocal %32 : vector<8x1xf32> -> vector<8x1xf32>
    %36 = arith.mulf %34, %35 : vector<8x1xf32>
    %cst_20 = arith.constant dense<0x7F800000> : vector<8xf32>
    %37 = vector.multi_reduction <minimumf>, %21, %cst_20 [1] : vector<8x8xf32> to vector<8xf32>
    %38 = vector.shape_cast %37 : vector<8xf32> to vector<8x1xf32>
    %39 = vector.broadcast %38 : vector<8x1xf32> to vector<8x8xf32>
    %40 = arith.subf %39, %21 : vector<8x8xf32>
    %41 = math.exp %40 : vector<8x8xf32>
    %cst_21 = arith.constant 0.000000e+00 : f32
    %42 = vector.broadcast %cst_21 : f32 to vector<8x8xf32>
    %43 = arith.select %8, %42, %41 : vector<8x8xi1>, vector<8x8xf32>
    %cst_22 = arith.constant dense<0.000000e+00> : vector<8x1xf32>
    %44 = tpu.matmul %43, %22, %cst_22 {dimension_numbers = #tpu.dot_dimension_numbers<[1], [0], [0], [1], [0, 0, 1, 1], [], []>} : vector<8x8xf32>, vector<8x1xf32>, vector<8x1xf32> -> vector<8x1xf32>
    %cst_23 = arith.constant 9.99999997E-7 : f32
    %45 = vector.broadcast %cst_23 : f32 to vector<8x1xf32>
    %46 = arith.addf %44, %45 : vector<8x1xf32>
    %47 = arith.mulf %18, %43 : vector<8x8xf32>
    %cst_24 = arith.constant dense<0.000000e+00> : vector<8x1xf32>
    %48 = tpu.matmul %47, %22, %cst_24 {dimension_numbers = #tpu.dot_dimension_numbers<[1], [0], [0], [1], [0, 0, 1, 1], [], []>} : vector<8x8xf32>, vector<8x1xf32>, vector<8x1xf32> -> vector<8x1xf32>
    %49 = tpu.reciprocal %46 : vector<8x1xf32> -> vector<8x1xf32>
    %50 = arith.mulf %48, %49 : vector<8x1xf32>
    %51 = arith.subf %50, %36 : vector<8x1xf32>
    %cst_25 = arith.constant 0.000000e+00 : f32
    %52 = vector.broadcast %cst_25 : f32 to vector<8x1xf32>
    %53 = arith.subf %52, %51 : vector<8x1xf32>
    %cst_26 = arith.constant 0.000000e+00 : f32
    %54 = vector.broadcast %cst_26 : f32 to vector<8x1xf32>
    %55 = arith.maximumf %53, %54 : vector<8x1xf32>
    %56 = math.absf %51 : vector<8x1xf32>
    %cst_27 = arith.constant 0.000000e+00 : f32
    %57 = vector.broadcast %cst_27 : f32 to vector<8x1xf32>
    %58 = arith.subf %57, %56 : vector<8x1xf32>
    %59 = math.exp %58 : vector<8x1xf32>
    %60 = math.log1p %59 : vector<8x1xf32>
    %61 = arith.addf %55, %60 : vector<8x1xf32>
    %c0_28 = arith.constant 0 : index
    %c0_29 = arith.constant 0 : index
    %62 = vector.load %arg7[%c0_28, %c0_29] : memref<8x1xf32, #tpu.memory_space<vmem>>, vector<8x1xf32>
    tpu.vector_store %arg7[%c0_28, %c0_29], %61 {strides = array<i32>} : memref<8x1xf32, #tpu.memory_space<vmem>>, vector<8x1xf32>,
    return
  }
  func.func @transform_0(%arg0: i32) -> (i32, i32) {
    %c0_i32 = arith.constant 0 : i32
    %c0_i32_0 = arith.constant 0 : i32
    return %arg0, %c0_i32 : i32, i32
  }
  func.func @transform_1(%arg0: i32) -> (i32, i32) {
    %c0_i32 = arith.constant 0 : i32
    %c0_i32_0 = arith.constant 0 : i32
    %c0_i32_1 = arith.constant 0 : i32
    return %c0_i32, %c0_i32_0 : i32, i32
  }
  func.func @transform_2(%arg0: i32) -> (i32, i32) {
    %c0_i32 = arith.constant 0 : i32
    %c0_i32_0 = arith.constant 0 : i32
    return %arg0, %c0_i32 : i32, i32
  }
  func.func @transform_3(%arg0: i32) -> (i32, i32) {
    %c0_i32 = arith.constant 0 : i32
    %c0_i32_0 = arith.constant 0 : i32
    %c0_i32_1 = arith.constant 0 : i32
    return %c0_i32, %c0_i32_0 : i32, i32
  }
  func.func @transform_4(%arg0: i32) -> (i32, i32) {
    %c0_i32 = arith.constant 0 : i32
    %c0_i32_0 = arith.constant 0 : i32
    return %arg0, %c0_i32 : i32, i32
  }
  func.func @transform_5(%arg0: i32) -> (i32, i32) {
    %c0_i32 = arith.constant 0 : i32
    %c0_i32_0 = arith.constant 0 : i32
    %c0_i32_1 = arith.constant 0 : i32
    return %c0_i32, %c0_i32_0 : i32, i32
  }
  func.func @transform_6(%arg0: i32) -> (i32, i32) {
    %c0_i32 = arith.constant 0 : i32
    %c0_i32_0 = arith.constant 0 : i32
    return %arg0, %c0_i32 : i32, i32
  }
}

</mosaic_0001>

<llo_original>
// kernel: tpu_custom_call.1
$region0: #{tpu_custom_call.1}
  #allocation0 [shape = 'u32[]', space=smem, size = 0x4, offset = 0x4, fixed_abs, tag = 'smem constant byte address 0x4 - core index']
  #allocation1 [shape = 'u32[144,128]{1,0:T(1,128)}', space=vmem, size = 0x12000, scoped, tag = 'internal scratch']
  %s0 = inlined_call_operand.vmem [shape: f32[8,32], index: 0, kind: input, shape index: {}]
  %s1 = inlined_call_operand.vmem [shape: f32[8,32], index: 1, kind: input, shape index: {}]
  %s2 = inlined_call_operand.vmem [shape: f32[8,1], index: 2, kind: input, shape index: {}]
  %s3 = inlined_call_operand.vmem [shape: f32[1,8], index: 3, kind: input, shape index: {}]
  %s4 = inlined_call_operand.vmem [shape: s32[8,1], index: 4, kind: input, shape index: {}]
  %s5 = inlined_call_operand.vmem [shape: s32[1,8], index: 5, kind: input, shape index: {}]
  %s6 = inlined_call_operand.vmem [shape: f32[8,1], index: 6, kind: output, shape index: {}]
  %s7 = sld [smem:[#allocation0]]
  $region34: #{tpu_custom_call.1} parent=0
    _
  %s9 = ssub.s32 1, %s7
  %s10 = scalar_select 0, %s9, %s7
  // Predicated region
  $region2: #{tpu_custom_call.1} parent=0 // pred_check
    _
  $region3: #{tpu_custom_call.1} parent=0 // pred_check_branch
    %12 = sbr.rel (0) target = $region5
  $region4: #{tpu_custom_call.1} parent=0 // pred_region
    _
  $region5: #{tpu_custom_call.1} parent=0 // pred_fallthru
    _
  // Predicated region
  $region6: #{tpu_custom_call.1} parent=0 // pred_check
    _
  $region7: #{tpu_custom_call.1} parent=0 // pred_check_branch
    %14 = sbr.rel (0) target = $region9
  $region8: #{tpu_custom_call.1} parent=0 // pred_region
    _
  $region9: #{tpu_custom_call.1} parent=0 // pred_fallthru
    _
  // Predicated region
  $region10: #{tpu_custom_call.1} parent=0 // pred_check
    _
  $region11: #{tpu_custom_call.1} parent=0 // pred_check_branch
    %16 = sbr.rel (0) target = $region13
  $region12: #{tpu_custom_call.1} parent=0 // pred_region
    _
  $region13: #{tpu_custom_call.1} parent=0 // pred_fallthru
    _
  // Predicated region
  $region14: #{tpu_custom_call.1} parent=0 // pred_check
    _
  $region15: #{tpu_custom_call.1} parent=0 // pred_check_branch
    %18 = sbr.rel (0) target = $region17
  $region16: #{tpu_custom_call.1} parent=0 // pred_region
    _
  $region17: #{tpu_custom_call.1} parent=0 // pred_fallthru
    _
  // Predicated region
  $region18: #{tpu_custom_call.1} parent=0 // pred_check
    _
  $region19: #{tpu_custom_call.1} parent=0 // pred_check_branch
    %20 = sbr.rel (0) target = $region21
  $region20: #{tpu_custom_call.1} parent=0 // pred_region
    _
  $region21: #{tpu_custom_call.1} parent=0 // pred_fallthru
    _
  // Predicated region
  $region22: #{tpu_custom_call.1} parent=0 // pred_check
    _
  $region23: #{tpu_custom_call.1} parent=0 // pred_check_branch
    %22 = sbr.rel (0) target = $region25
  $region24: #{tpu_custom_call.1} parent=0 // pred_region
    _
  $region25: #{tpu_custom_call.1} parent=0 // pred_fallthru
    _
  %v23 = vld [vmem:[%s0] sm:$0xff]
  %v24 = vld [vmem:[%s1] sm:$0xff]
  %v25 = vld [vmem:[%s2] sm:$0xff]
  %v26 = vld [vmem:[%s3] sm:$0x1]
  %v27 = vld [vmem:[%s4] sm:$0xff]
  %v28 = vld [vmem:[%s5] sm:$0x1]
  %29 = vset.pattern.permute.xlu0 0
  %30 = vperm.xlu0 %29, %v27
  %v31 = vpop.permute.xlu0 %30
  %v32 = vlaneseq
  %v33 = vshrl.u32 %v32, 7
  %v34 = vsub.s32 0, %v33
  %v35 = vrot.slane %v28, %v34
  %vm36 = vcmp.eq.s32.totalorder %v31, %v35
  %vm37 = vcmask 261120
  %v39 = vsel %vm37, %v23, 0
  %v42 = vsel %vm37, %v24, 0
  %44 = vmatprep.subr.mxu0 0.0
  %45 = vmatpush1.xpose.msra.mxu0 %v42
  %46 = vmatprep.subr.mxu0 0.0
  %47 = vmatpush1.xpose.msra.mxu0 0.0
  %48 = vmatprep.subr.mxu0 0.0
  %49 = vmatpush1.xpose.msra.mxu0 0.0
  %50 = vmatprep.subr.mxu0 0.0
  %51 = vmatpush1.xpose.msra.mxu0 0.0
  %52 = vmatprep.subr.mxu0 0.0
  %53 = vmatpush1.xpose.msra.mxu0 0.0
  %54 = vmatprep.subr.mxu0 0.0
  %55 = vmatpush1.xpose.msra.mxu0 0.0
  %56 = vmatprep.subr.mxu0 0.0
  %57 = vmatpush1.xpose.msra.mxu0 0.0
  %58 = vmatprep.subr.mxu0 0.0
  %59 = vmatpush1.xpose.msra.mxu0 0.0
  %60 = vmatprep.subr.mxu0 0.0
  %61 = vmatpush1.xpose.msra.mxu0 0.0
  %62 = vmatprep.subr.mxu0 0.0
  %63 = vmatpush1.xpose.msra.mxu0 0.0
  %64 = vmatprep.subr.mxu0 0.0
  %65 = vmatpush1.xpose.msra.mxu0 0.0
  %66 = vmatprep.subr.mxu0 0.0
  %67 = vmatpush1.xpose.msra.mxu0 0.0
  %68 = vmatprep.subr.mxu0 0.0
  %69 = vmatpush1.xpose.msra.mxu0 0.0
  %70 = vmatprep.subr.mxu0 0.0
  %71 = vmatpush1.xpose.msra.mxu0 0.0
  %72 = vmatprep.subr.mxu0 0.0
  %73 = vmatpush1.xpose.msra.mxu0 0.0
  %74 = vmatprep.subr.mxu0 0.0
  %75 = vmatpush1.xpose.msra.mxu0 0.0
  %76 = vmatprep.subr.mxu0 0.0
  %77 = vmatpush1.xpose.msra.mxu0 0.0
  %78 = vmatprep.subr.mxu0 0.0
  %79 = vmatpush1.xpose.msra.mxu0 0.0
  %80 = vmatprep.subr.mxu0 0.0
  %81 = vmatpush1.xpose.msra.mxu0 0.0
  %82 = vmatprep.subr.mxu0 0.0
  %83 = vmatpush1.xpose.msra.mxu0 0.0
  %84 = vmatprep.subr.mxu0 0.0
  %85 = vmatpush1.xpose.msra.mxu0 0.0
  %86 = vmatprep.subr.mxu0 0.0
  %87 = vmatpush1.xpose.msra.mxu0 0.0
  %88 = vmatprep.subr.mxu0 0.0
  %89 = vmatpush1.xpose.msra.mxu0 0.0
  %90 = vmatprep.subr.mxu0 0.0
  %91 = vmatpush1.xpose.msra.mxu0 0.0
  %92 = vmatprep.subr.mxu0 0.0
  %93 = vmatpush1.xpose.msra.mxu0 0.0
  %94 = vmatprep.subr.mxu0 0.0
  %95 = vmatpush1.xpose.msra.mxu0 0.0
  %96 = vmatprep.subr.mxu0 0.0
  %97 = vmatpush1.xpose.msra.mxu0 0.0
  %98 = vmatprep.subr.mxu0 0.0
  %99 = vmatpush1.xpose.msra.mxu0 0.0
  %100 = vmatprep.subr.mxu0 0.0
  %101 = vmatpush1.xpose.msra.mxu0 0.0
  %102 = vmatprep.subr.mxu0 0.0
  %103 = vmatpush1.xpose.msra.mxu0 0.0
  %104 = vmatprep.subr.mxu0 0.0
  %105 = vmatpush1.xpose.msra.mxu0 0.0
  %106 = vmatprep.subr.mxu0 0.0
  %107 = vmatpush1.xpose.msra.mxu0 0.0
  %108 = vmatprep.mubr.f32.mxu0 0.0
  %109 = vmatmul.mubr.f32.gmra.mrb[0].mxu0 %v39
  %v110 = vpop.f32.mrb[0].mxu0
  %v111 = vadd.f32 0.0, %v110
  %v112 = vpop.f32.mrb[0].mxu0
  %113 = vdwg.mxu0
  %115 = vset.pattern.permute.xlu0 0
  %116 = vperm.xlu0 %115, %v25
  %v117 = vpop.permute.xlu0 %116
  %v120 = vlaneseq
  %v121 = vshrl.u32 %v120, 7
  %v122 = vsub.s32 0, %v121
  %v123 = vrot.slane %v26, %v122
  %v125 = vadd.f32 %v117, %v123
  %v126 = vmul.f32 %v111, 2.0
  %v127 = vsub.f32 %v125, %v126
  %v128 = vmax.f32 %v127, 1e-12
  %v129 = vrsqrt.pop %v128
  %v130 = vmul.f32 %v128, %v129
  %vm131 = vcmp.eq.f32.partialorder %v128, inf
  %v132 = vsel %vm131, %v128, %v130
  %vm133 = vcmp.eq.f32.partialorder %v128, 0.0
  %v134 = vand.u32 %v128, 2147483648
  %v135 = vsel %vm133, %v134, %v132
  %v136 = vsel %vm36, %v135, 0.0
  %v137 = vsub.f32 %v135, %v136
  %vm138 = vcmask 64512
  %v139 = vsel %vm138, %v136, -inf
  %140 = vmax.xlane.f32.xlu0 %v139
  %v141 = vpop.xlane.xlu0 %140
  %v142 = vsub.f32 %v136, %v141
  %v143 = vmul.f32 %v142, 1.442695
  %v144 = vpow.pop %v143
  %v145 = vsel %vm36, %v144, 0.0
  %v147 = vsel %vm138, %v145, 0
  %149 = vmatprep.subr.mxu0 0.0
  %150 = vmatpush1.msra.mxu0 1.0
  %151 = vmatprep.subr.mxu0 0.0
  %152 = vmatpush1.msra.mxu0 0.0
  %153 = vmatprep.subr.mxu0 0.0
  %154 = vmatpush1.msra.mxu0 0.0
  %155 = vmatprep.subr.mxu0 0.0
  %156 = vmatpush1.msra.mxu0 0.0
  %157 = vmatprep.subr.mxu0 0.0
  %158 = vmatpush1.msra.mxu0 0.0
  %159 = vmatprep.subr.mxu0 0.0
  %160 = vmatpush1.msra.mxu0 0.0
  %161 = vmatprep.subr.mxu0 0.0
  %162 = vmatpush1.msra.mxu0 0.0
  %163 = vmatprep.subr.mxu0 0.0
  %164 = vmatpush1.msra.mxu0 0.0
  %165 = vmatprep.subr.mxu0 0.0
  %166 = vmatpush1.msra.mxu0 0.0
  %167 = vmatprep.subr.mxu0 0.0
  %168 = vmatpush1.msra.mxu0 0.0
  %169 = vmatprep.subr.mxu0 0.0
  %170 = vmatpush1.msra.mxu0 0.0
  %171 = vmatprep.subr.mxu0 0.0
  %172 = vmatpush1.msra.mxu0 0.0
  %173 = vmatprep.subr.mxu0 0.0
  %174 = vmatpush1.msra.mxu0 0.0
  %175 = vmatprep.subr.mxu0 0.0
  %176 = vmatpush1.msra.mxu0 0.0
  %177 = vmatprep.subr.mxu0 0.0
  %178 = vmatpush1.msra.mxu0 0.0
  %179 = vmatprep.subr.mxu0 0.0
  %180 = vmatpush1.msra.mxu0 0.0
  %181 = vmatprep.subr.mxu0 0.0
  %182 = vmatpush1.msra.mxu0 0.0
  %183 = vmatprep.subr.mxu0 0.0
  %184 = vmatpush1.msra.mxu0 0.0
  %185 = vmatprep.subr.mxu0 0.0
  %186 = vmatpush1.msra.mxu0 0.0
  %187 = vmatprep.subr.mxu0 0.0
  %188 = vmatpush1.msra.mxu0 0.0
  %189 = vmatprep.subr.mxu0 0.0
  %190 = vmatpush1.msra.mxu0 0.0
  %191 = vmatprep.subr.mxu0 0.0
  %192 = vmatpush1.msra.mxu0 0.0
  %193 = vmatprep.subr.mxu0 0.0
  %194 = vmatpush1.msra.mxu0 0.0
  %195 = vmatprep.subr.mxu0 0.0
  %196 = vmatpush1.msra.mxu0 0.0
  %197 = vmatprep.subr.mxu0 0.0
  %198 = vmatpush1.msra.mxu0 0.0
  %199 = vmatprep.subr.mxu0 0.0
  %200 = vmatpush1.msra.mxu0 0.0
  %201 = vmatprep.subr.mxu0 0.0
  %202 = vmatpush1.msra.mxu0 0.0
  %203 = vmatprep.subr.mxu0 0.0
  %204 = vmatpush1.msra.mxu0 0.0
  %205 = vmatprep.subr.mxu0 0.0
  %206 = vmatpush1.msra.mxu0 0.0
  %207 = vmatprep.subr.mxu0 0.0
  %208 = vmatpush1.msra.mxu0 0.0
  %209 = vmatprep.subr.mxu0 0.0
  %210 = vmatpush1.msra.mxu0 0.0
  %211 = vmatprep.subr.mxu0 0.0
  %212 = vmatpush1.msra.mxu0 0.0
  %213 = vmatprep.mubr.f32.mxu0 0.0
  %214 = vmatmul.mubr.f32.gmra.mrb[0].mxu0 %v147
  %v215 = vpop.f32.mrb[0].mxu0
  %v216 = vadd.f32 1e-06, %v215
  %v217 = vpop.f32.mrb[0].mxu0
  %218 = vdwg.mxu0
  %v219 = vmul.f32 %v135, %v145
  %v221 = vsel %vm138, %v219, 0
  %223 = vmatprep.subr.mxu0 0.0
  %224 = vmatpush1.msra.mxu0 1.0
  %225 = vmatprep.subr.mxu0 0.0
  %226 = vmatpush1.msra.mxu0 0.0
  %227 = vmatprep.subr.mxu0 0.0
  %228 = vmatpush1.msra.mxu0 0.0
  %229 = vmatprep.subr.mxu0 0.0
  %230 = vmatpush1.msra.mxu0 0.0
  %231 = vmatprep.subr.mxu0 0.0
  %232 = vmatpush1.msra.mxu0 0.0
  %233 = vmatprep.subr.mxu0 0.0
  %234 = vmatpush1.msra.mxu0 0.0
  %235 = vmatprep.subr.mxu0 0.0
  %236 = vmatpush1.msra.mxu0 0.0
  %237 = vmatprep.subr.mxu0 0.0
  %238 = vmatpush1.msra.mxu0 0.0
  %239 = vmatprep.subr.mxu0 0.0
  %240 = vmatpush1.msra.mxu0 0.0
  %241 = vmatprep.subr.mxu0 0.0
  %242 = vmatpush1.msra.mxu0 0.0
  %243 = vmatprep.subr.mxu0 0.0
  %244 = vmatpush1.msra.mxu0 0.0
  %245 = vmatprep.subr.mxu0 0.0
  %246 = vmatpush1.msra.mxu0 0.0
  %247 = vmatprep.subr.mxu0 0.0
  %248 = vmatpush1.msra.mxu0 0.0
  %249 = vmatprep.subr.mxu0 0.0
  %250 = vmatpush1.msra.mxu0 0.0
  %251 = vmatprep.subr.mxu0 0.0
  %252 = vmatpush1.msra.mxu0 0.0
  %253 = vmatprep.subr.mxu0 0.0
  %254 = vmatpush1.msra.mxu0 0.0
  %255 = vmatprep.subr.mxu0 0.0
  %256 = vmatpush1.msra.mxu0 0.0
  %257 = vmatprep.subr.mxu0 0.0
  %258 = vmatpush1.msra.mxu0 0.0
  %259 = vmatprep.subr.mxu0 0.0
  %260 = vmatpush1.msra.mxu0 0.0
  %261 = vmatprep.subr.mxu0 0.0
  %262 = vmatpush1.msra.mxu0 0.0
  %263 = vmatprep.subr.mxu0 0.0
  %264 = vmatpush1.msra.mxu0 0.0
  %265 = vmatprep.subr.mxu0 0.0
  %266 = vmatpush1.msra.mxu0 0.0
  %267 = vmatprep.subr.mxu0 0.0
  %268 = vmatpush1.msra.mxu0 0.0
  %269 = vmatprep.subr.mxu0 0.0
  %270 = vmatpush1.msra.mxu0 0.0
  %271 = vmatprep.subr.mxu0 0.0
  %272 = vmatpush1.msra.mxu0 0.0
  %273 = vmatprep.subr.mxu0 0.0
  %274 = vmatpush1.msra.mxu0 0.0
  %275 = vmatprep.subr.mxu0 0.0
  %276 = vmatpush1.msra.mxu0 0.0
  %277 = vmatprep.subr.mxu0 0.0
  %278 = vmatpush1.msra.mxu0 0.0
  %279 = vmatprep.subr.mxu0 0.0
  %280 = vmatpush1.msra.mxu0 0.0
  %281 = vmatprep.subr.mxu0 0.0
  %282 = vmatpush1.msra.mxu0 0.0
  %283 = vmatprep.subr.mxu0 0.0
  %284 = vmatpush1.msra.mxu0 0.0
  %285 = vmatprep.subr.mxu0 0.0
  %286 = vmatpush1.msra.mxu0 0.0
  %287 = vmatprep.mubr.f32.mxu0 0.0
  %288 = vmatmul.mubr.f32.gmra.mrb[0].mxu0 %v221
  %v289 = vpop.f32.mrb[0].mxu0
  %v290 = vadd.f32 0.0, %v289
  %v291 = vpop.f32.mrb[0].mxu0
  %292 = vdwg.mxu0
  %v293 = vrcp.pop %v216
  %v294 = vmul.f32 %v290, %v293
  %v295 = vsel %vm138, %v137, inf
  %296 = vmin.xlane.f32.xlu0 %v295
  %v297 = vpop.xlane.xlu0 %296
  %v298 = vsub.f32 %v297, %v137
  %v299 = vmul.f32 %v298, 1.442695
  %v300 = vpow.pop %v299
  %v301 = vsel %vm36, 0.0, %v300
  %v303 = vsel %vm138, %v301, 0
  %305 = vmatprep.subr.mxu0 0.0
  %306 = vmatpush1.msra.mxu0 1.0
  %307 = vmatprep.subr.mxu0 0.0
  %308 = vmatpush1.msra.mxu0 0.0
  %309 = vmatprep.subr.mxu0 0.0
  %310 = vmatpush1.msra.mxu0 0.0
  %311 = vmatprep.subr.mxu0 0.0
  %312 = vmatpush1.msra.mxu0 0.0
  %313 = vmatprep.subr.mxu0 0.0
  %314 = vmatpush1.msra.mxu0 0.0
  %315 = vmatprep.subr.mxu0 0.0
  %316 = vmatpush1.msra.mxu0 0.0
  %317 = vmatprep.subr.mxu0 0.0
  %318 = vmatpush1.msra.mxu0 0.0
  %319 = vmatprep.subr.mxu0 0.0
  %320 = vmatpush1.msra.mxu0 0.0
  %321 = vmatprep.subr.mxu0 0.0
  %322 = vmatpush1.msra.mxu0 0.0
  %323 = vmatprep.subr.mxu0 0.0
  %324 = vmatpush1.msra.mxu0 0.0
  %325 = vmatprep.subr.mxu0 0.0
  %326 = vmatpush1.msra.mxu0 0.0
  %327 = vmatprep.subr.mxu0 0.0
  %328 = vmatpush1.msra.mxu0 0.0
  %329 = vmatprep.subr.mxu0 0.0
  %330 = vmatpush1.msra.mxu0 0.0
  %331 = vmatprep.subr.mxu0 0.0
  %332 = vmatpush1.msra.mxu0 0.0
  %333 = vmatprep.subr.mxu0 0.0
  %334 = vmatpush1.msra.mxu0 0.0
  %335 = vmatprep.subr.mxu0 0.0
  %336 = vmatpush1.msra.mxu0 0.0
  %337 = vmatprep.subr.mxu0 0.0
  %338 = vmatpush1.msra.mxu0 0.0
  %339 = vmatprep.subr.mxu0 0.0
  %340 = vmatpush1.msra.mxu0 0.0
  %341 = vmatprep.subr.mxu0 0.0
  %342 = vmatpush1.msra.mxu0 0.0
  %343 = vmatprep.subr.mxu0 0.0
  %344 = vmatpush1.msra.mxu0 0.0
  %345 = vmatprep.subr.mxu0 0.0
  %346 = vmatpush1.msra.mxu0 0.0
  %347 = vmatprep.subr.mxu0 0.0
  %348 = vmatpush1.msra.mxu0 0.0
  %349 = vmatprep.subr.mxu0 0.0
  %350 = vmatpush1.msra.mxu0 0.0
  %351 = vmatprep.subr.mxu0 0.0
  %352 = vmatpush1.msra.mxu0 0.0
  %353 = vmatprep.subr.mxu0 0.0
  %354 = vmatpush1.msra.mxu0 0.0
  %355 = vmatprep.subr.mxu0 0.0
  %356 = vmatpush1.msra.mxu0 0.0
  %357 = vmatprep.subr.mxu0 0.0
  %358 = vmatpush1.msra.mxu0 0.0
  %359 = vmatprep.subr.mxu0 0.0
  %360 = vmatpush1.msra.mxu0 0.0
  %361 = vmatprep.subr.mxu0 0.0
  %362 = vmatpush1.msra.mxu0 0.0
  %363 = vmatprep.subr.mxu0 0.0
  %364 = vmatpush1.msra.mxu0 0.0
  %365 = vmatprep.subr.mxu0 0.0
  %366 = vmatpush1.msra.mxu0 0.0
  %367 = vmatprep.subr.mxu0 0.0
  %368 = vmatpush1.msra.mxu0 0.0
  %369 = vmatprep.mubr.f32.mxu0 0.0
  %370 = vmatmul.mubr.f32.gmra.mrb[0].mxu0 %v303
  %v371 = vpop.f32.mrb[0].mxu0
  %v372 = vadd.f32 1e-06, %v371
  %v373 = vpop.f32.mrb[0].mxu0
  %374 = vdwg.mxu0
  %v375 = vmul.f32 %v135, %v301
  %v377 = vsel %vm138, %v375, 0
  %379 = vmatprep.subr.mxu0 0.0
  %380 = vmatpush1.msra.mxu0 1.0
  %381 = vmatprep.subr.mxu0 0.0
  %382 = vmatpush1.msra.mxu0 0.0
  %383 = vmatprep.subr.mxu0 0.0
  %384 = vmatpush1.msra.mxu0 0.0
  %385 = vmatprep.subr.mxu0 0.0
  %386 = vmatpush1.msra.mxu0 0.0
  %387 = vmatprep.subr.mxu0 0.0
  %388 = vmatpush1.msra.mxu0 0.0
  %389 = vmatprep.subr.mxu0 0.0
  %390 = vmatpush1.msra.mxu0 0.0
  %391 = vmatprep.subr.mxu0 0.0
  %392 = vmatpush1.msra.mxu0 0.0
  %393 = vmatprep.subr.mxu0 0.0
  %394 = vmatpush1.msra.mxu0 0.0
  %395 = vmatprep.subr.mxu0 0.0
  %396 = vmatpush1.msra.mxu0 0.0
  %397 = vmatprep.subr.mxu0 0.0
  %398 = vmatpush1.msra.mxu0 0.0
  %399 = vmatprep.subr.mxu0 0.0
  %400 = vmatpush1.msra.mxu0 0.0
  %401 = vmatprep.subr.mxu0 0.0
  %402 = vmatpush1.msra.mxu0 0.0
  %403 = vmatprep.subr.mxu0 0.0
  %404 = vmatpush1.msra.mxu0 0.0
  %405 = vmatprep.subr.mxu0 0.0
  %406 = vmatpush1.msra.mxu0 0.0
  %407 = vmatprep.subr.mxu0 0.0
  %408 = vmatpush1.msra.mxu0 0.0
  %409 = vmatprep.subr.mxu0 0.0
  %410 = vmatpush1.msra.mxu0 0.0
  %411 = vmatprep.subr.mxu0 0.0
  %412 = vmatpush1.msra.mxu0 0.0
  %413 = vmatprep.subr.mxu0 0.0
  %414 = vmatpush1.msra.mxu0 0.0
  %415 = vmatprep.subr.mxu0 0.0
  %416 = vmatpush1.msra.mxu0 0.0
  %417 = vmatprep.subr.mxu0 0.0
  %418 = vmatpush1.msra.mxu0 0.0
  %419 = vmatprep.subr.mxu0 0.0
  %420 = vmatpush1.msra.mxu0 0.0
  %421 = vmatprep.subr.mxu0 0.0
  %422 = vmatpush1.msra.mxu0 0.0
  %423 = vmatprep.subr.mxu0 0.0
  %424 = vmatpush1.msra.mxu0 0.0
  %425 = vmatprep.subr.mxu0 0.0
  %426 = vmatpush1.msra.mxu0 0.0
  %427 = vmatprep.subr.mxu0 0.0
  %428 = vmatpush1.msra.mxu0 0.0
  %429 = vmatprep.subr.mxu0 0.0
  %430 = vmatpush1.msra.mxu0 0.0
  %431 = vmatprep.subr.mxu0 0.0
  %432 = vmatpush1.msra.mxu0 0.0
  %433 = vmatprep.subr.mxu0 0.0
  %434 = vmatpush1.msra.mxu0 0.0
  %435 = vmatprep.subr.mxu0 0.0
  %436 = vmatpush1.msra.mxu0 0.0
  %437 = vmatprep.subr.mxu0 0.0
  %438 = vmatpush1.msra.mxu0 0.0
  %439 = vmatprep.subr.mxu0 0.0
  %440 = vmatpush1.msra.mxu0 0.0
  %441 = vmatprep.subr.mxu0 0.0
  %442 = vmatpush1.msra.mxu0 0.0
  %443 = vmatprep.mubr.f32.mxu0 0.0
  %444 = vmatmul.mubr.f32.gmra.mrb[0].mxu0 %v377
  %v445 = vpop.f32.mrb[0].mxu0
  %v446 = vadd.f32 0.0, %v445
  %v447 = vpop.f32.mrb[0].mxu0
  %448 = vdwg.mxu0
  %v449 = vrcp.pop %v372
  %v450 = vmul.f32 %v446, %v449
  %v451 = vsub.f32 %v450, %v294
  %v452 = vsub.f32 0.0, %v451
  %v453 = vmax.f32 %v452, 0.0
  %v454 = vand.u32 2147483647, %v451
  %v455 = vsub.f32 0.0, %v454
  %v456 = vmul.f32 %v455, 1.442695
  %v457 = vpow.pop %v456
  %v458 = vadd.f32 %v457, 1.0
  %v459 = vlog2.pop %v458
  %v460 = vmul.f32 %v459, 0.6931472
  %v461 = vmul.f32 -0.5, %v457
  %v462 = vadd.f32 %v461, 1.0
  %v463 = vmul.f32 %v462, %v457
  %v464 = vand.u32 2147483647, %v457
  %vm465 = vcmp.lt.f32.partialorder %v464, 0.0004427343
  %v466 = vsel %vm465, %v463, %v460
  %v467 = vadd.f32 %v453, %v466
  %vm468 = vcmask 7168
  %469 = vst.msk [vmem:[%s6] sm:$0xff] %vm468, %v467
  // Predicated region
  $region26: #{tpu_custom_call.1} parent=0 // pred_check
    _
  $region27: #{tpu_custom_call.1} parent=0 // pred_check_branch
    %471 = sbr.rel (0) target = $region29
  $region28: #{tpu_custom_call.1} parent=0 // pred_region
    _
  $region29: #{tpu_custom_call.1} parent=0 // pred_fallthru
    _
  // Predicated region
  $region30: #{tpu_custom_call.1} parent=0 // pred_check
    _
  $region31: #{tpu_custom_call.1} parent=0 // pred_check_branch
    %473 = sbr.rel (0) target = $region33
  $region32: #{tpu_custom_call.1} parent=0 // pred_region
    _
  $region33: #{tpu_custom_call.1} parent=0 // pred_fallthru
    _

// kernel: tpu_custom_call.1
$region0: #{tpu_custom_call.1}
  #allocation0 [shape = 'u32[]', space=smem, size = 0x4, offset = 0x4, fixed_abs, tag = 'smem constant byte address 0x4 - core index']
  #allocation1 [shape = 'u32[144,128]{1,0:T(1,128)}', space=vmem, size = 0x12000, scoped, tag = 'internal scratch']
  %s0 = inlined_call_operand.vmem [shape: f32[8,32], index: 0, kind: input, shape index: {}]
  %s1 = inlined_call_operand.vmem [shape: f32[8,32], index: 1, kind: input, shape index: {}]
  %s2 = inlined_call_operand.vmem [shape: f32[8,1], index: 2, kind: input, shape index: {}]
  %s3 = inlined_call_operand.vmem [shape: f32[1,8], index: 3, kind: input, shape index: {}]
  %s4 = inlined_call_operand.vmem [shape: s32[8,1], index: 4, kind: input, shape index: {}]
  %s5 = inlined_call_operand.vmem [shape: s32[1,8], index: 5, kind: input, shape index: {}]
  %s6 = inlined_call_operand.vmem [shape: f32[8,1], index: 6, kind: output, shape index: {}]
  %s7 = sld [smem:[#allocation0]]
  $region34: #{tpu_custom_call.1} parent=0
    _
  %s9 = ssub.s32 1, %s7
  %s10 = scalar_select 0, %s9, %s7
  // Predicated region
  $region2: #{tpu_custom_call.1} parent=0 // pred_check
    _
  $region3: #{tpu_custom_call.1} parent=0 // pred_check_branch
    %12 = sbr.rel (0) target = $region5
  $region4: #{tpu_custom_call.1} parent=0 // pred_region
    _
  $region5: #{tpu_custom_call.1} parent=0 // pred_fallthru
    _
  // Predicated region
  $region6: #{tpu_custom_call.1} parent=0 // pred_check
    _
  $region7: #{tpu_custom_call.1} parent=0 // pred_check_branch
    %14 = sbr.rel (0) target = $region9
  $region8: #{tpu_custom_call.1} parent=0 // pred_region
    _
  $region9: #{tpu_custom_call.1} parent=0 // pred_fallthru
    _
  // Predicated region
  $region10: #{tpu_custom_call.1} parent=0 // pred_check
    _
  $region11: #{tpu_custom_call.1} parent=0 // pred_check_branch
    %16 = sbr.rel (0) target = $region13
  $region12: #{tpu_custom_call.1} parent=0 // pred_region
    _
  $region13: #{tpu_custom_call.1} parent=0 // pred_fallthru
    _
  // Predicated region
  $region14: #{tpu_custom_call.1} parent=0 // pred_check
    _
  $region15: #{tpu_custom_call.1} parent=0 // pred_check_branch
    %18 = sbr.rel (0) target = $region17
  $region16: #{tpu_custom_call.1} parent=0 // pred_region
    _
  $region17: #{tpu_custom_call.1} parent=0 // pred_fallthru
    _
  // Predicated region
  $region18: #{tpu_custom_call.1} parent=0 // pred_check
    _
  $region19: #{tpu_custom_call.1} parent=0 // pred_check_branch
    %20 = sbr.rel (0) target = $region21
  $region20: #{tpu_custom_call.1} parent=0 // pred_region
    _
  $region21: #{tpu_custom_call.1} parent=0 // pred_fallthru
    _
  // Predicated region
  $region22: #{tpu_custom_call.1} parent=0 // pred_check
    _
  $region23: #{tpu_custom_call.1} parent=0 // pred_check_branch
    %22 = sbr.rel (0) target = $region25
  $region24: #{tpu_custom_call.1} parent=0 // pred_region
    _
  $region25: #{tpu_custom_call.1} parent=0 // pred_fallthru
    _
  %v23 = vld [vmem:[%s0] sm:$0xff]
  %v24 = vld [vmem:[%s1] sm:$0xff]
  %v25 = vld [vmem:[%s2] sm:$0xff]
  %v26 = vld [vmem:[%s3] sm:$0x1]
  %v27 = vld [vmem:[%s4] sm:$0xff]
  %v28 = vld [vmem:[%s5] sm:$0x1]
  %29 = vset.pattern.permute.xlu0 0
  %30 = vperm.xlu0 %29, %v27
  %v31 = vpop.permute.xlu0 %30
  %v32 = vlaneseq
  %v33 = vshrl.u32 %v32, 7
  %v34 = vsub.s32 0, %v33
  %v35 = vrot.slane %v28, %v34
  %vm36 = vcmp.eq.s32.totalorder %v31, %v35
  %vm37 = vcmask 261120
  %v39 = vsel %vm37, %v23, 0
  %v42 = vsel %vm37, %v24, 0
  %44 = vmatprep.subr.mxu0 0.0
  %45 = vmatpush1.xpose.msra.mxu0 %v42
  %46 = vmatprep.subr.mxu0 0.0
  %47 = vmatpush1.xpose.msra.mxu0 0.0
  %48 = vmatprep.subr.mxu0 0.0
  %49 = vmatpush1.xpose.msra.mxu0 0.0
  %50 = vmatprep.subr.mxu0 0.0
  %51 = vmatpush1.xpose.msra.mxu0 0.0
  %52 = vmatprep.subr.mxu0 0.0
  %53 = vmatpush1.xpose.msra.mxu0 0.0
  %54 = vmatprep.subr.mxu0 0.0
  %55 = vmatpush1.xpose.msra.mxu0 0.0
  %56 = vmatprep.subr.mxu0 0.0
  %57 = vmatpush1.xpose.msra.mxu0 0.0
  %58 = vmatprep.subr.mxu0 0.0
  %59 = vmatpush1.xpose.msra.mxu0 0.0
  %60 = vmatprep.subr.mxu0 0.0
  %61 = vmatpush1.xpose.msra.mxu0 0.0
  %62 = vmatprep.subr.mxu0 0.0
  %63 = vmatpush1.xpose.msra.mxu0 0.0
  %64 = vmatprep.subr.mxu0 0.0
  %65 = vmatpush1.xpose.msra.mxu0 0.0
  %66 = vmatprep.subr.mxu0 0.0
  %67 = vmatpush1.xpose.msra.mxu0 0.0
  %68 = vmatprep.subr.mxu0 0.0
  %69 = vmatpush1.xpose.msra.mxu0 0.0
  %70 = vmatprep.subr.mxu0 0.0
  %71 = vmatpush1.xpose.msra.mxu0 0.0
  %72 = vmatprep.subr.mxu0 0.0
  %73 = vmatpush1.xpose.msra.mxu0 0.0
  %74 = vmatprep.subr.mxu0 0.0
  %75 = vmatpush1.xpose.msra.mxu0 0.0
  %76 = vmatprep.subr.mxu0 0.0
  %77 = vmatpush1.xpose.msra.mxu0 0.0
  %78 = vmatprep.subr.mxu0 0.0
  %79 = vmatpush1.xpose.msra.mxu0 0.0
  %80 = vmatprep.subr.mxu0 0.0
  %81 = vmatpush1.xpose.msra.mxu0 0.0
  %82 = vmatprep.subr.mxu0 0.0
  %83 = vmatpush1.xpose.msra.mxu0 0.0
  %84 = vmatprep.subr.mxu0 0.0
  %85 = vmatpush1.xpose.msra.mxu0 0.0
  %86 = vmatprep.subr.mxu0 0.0
  %87 = vmatpush1.xpose.msra.mxu0 0.0
  %88 = vmatprep.subr.mxu0 0.0
  %89 = vmatpush1.xpose.msra.mxu0 0.0
  %90 = vmatprep.subr.mxu0 0.0
  %91 = vmatpush1.xpose.msra.mxu0 0.0
  %92 = vmatprep.subr.mxu0 0.0
  %93 = vmatpush1.xpose.msra.mxu0 0.0
  %94 = vmatprep.subr.mxu0 0.0
  %95 = vmatpush1.xpose.msra.mxu0 0.0
  %96 = vmatprep.subr.mxu0 0.0
  %97 = vmatpush1.xpose.msra.mxu0 0.0
  %98 = vmatprep.subr.mxu0 0.0
  %99 = vmatpush1.xpose.msra.mxu0 0.0
  %100 = vmatprep.subr.mxu0 0.0
  %101 = vmatpush1.xpose.msra.mxu0 0.0
  %102 = vmatprep.subr.mxu0 0.0
  %103 = vmatpush1.xpose.msra.mxu0 0.0
  %104 = vmatprep.subr.mxu0 0.0
  %105 = vmatpush1.xpose.msra.mxu0 0.0
  %106 = vmatprep.subr.mxu0 0.0
  %107 = vmatpush1.xpose.msra.mxu0 0.0
  %108 = vmatprep.mubr.f32.mxu0 0.0
  %109 = vmatmul.mubr.f32.gmra.mrb[0].mxu0 %v39
  %v110 = vpop.f32.mrb[0].mxu0
  %v111 = vadd.f32 0.0, %v110
  %v112 = vpop.f32.mrb[0].mxu0
  %113 = vdwg.mxu0
  %115 = vset.pattern.permute.xlu0 0
  %116 = vperm.xlu0 %115, %v25
  %v117 = vpop.permute.xlu0 %116
  %v120 = vlaneseq
  %v121 = vshrl.u32 %v120, 7
  %v122 = vsub.s32 0, %v121
  %v123 = vrot.slane %v26, %v122
  %v125 = vadd.f32 %v117, %v123
  %v126 = vmul.f32 %v111, 2.0
  %v127 = vsub.f32 %v125, %v126
  %v128 = vmax.f32 %v127, 1e-12
  %v129 = vrsqrt.pop %v128
  %v130 = vmul.f32 %v128, %v129
  %vm131 = vcmp.eq.f32.partialorder %v128, inf
  %v132 = vsel %vm131, %v128, %v130
  %vm133 = vcmp.eq.f32.partialorder %v128, 0.0
  %v134 = vand.u32 %v128, 2147483648
  %v135 = vsel %vm133, %v134, %v132
  %v136 = vsel %vm36, %v135, 0.0
  %v137 = vsub.f32 %v135, %v136
  %vm138 = vcmask 64512
  %v139 = vsel %vm138, %v136, -inf
  %140 = vmax.xlane.f32.xlu0 %v139
  %v141 = vpop.xlane.xlu0 %140
  %v142 = vsub.f32 %v136, %v141
  %v143 = vmul.f32 %v142, 1.442695
  %v144 = vpow.pop %v143
  %v145 = vsel %vm36, %v144, 0.0
  %v147 = vsel %vm138, %v145, 0
  %149 = vmatprep.subr.mxu0 0.0
  %150 = vmatpush1.msra.mxu0 1.0
  %151 = vmatprep.subr.mxu0 0.0
  %152 = vmatpush1.msra.mxu0 0.0
  %153 = vmatprep.subr.mxu0 0.0
  %154 = vmatpush1.msra.mxu0 0.0
  %155 = vmatprep.subr.mxu0 0.0
  %156 = vmatpush1.msra.mxu0 0.0
  %157 = vmatprep.subr.mxu0 0.0
  %158 = vmatpush1.msra.mxu0 0.0
  %159 = vmatprep.subr.mxu0 0.0
  %160 = vmatpush1.msra.mxu0 0.0
  %161 = vmatprep.subr.mxu0 0.0
  %162 = vmatpush1.msra.mxu0 0.0
  %163 = vmatprep.subr.mxu0 0.0
  %164 = vmatpush1.msra.mxu0 0.0
  %165 = vmatprep.subr.mxu0 0.0
  %166 = vmatpush1.msra.mxu0 0.0
  %167 = vmatprep.subr.mxu0 0.0
  %168 = vmatpush1.msra.mxu0 0.0
  %169 = vmatprep.subr.mxu0 0.0
  %170 = vmatpush1.msra.mxu0 0.0
  %171 = vmatprep.subr.mxu0 0.0
  %172 = vmatpush1.msra.mxu0 0.0
  %173 = vmatprep.subr.mxu0 0.0
  %174 = vmatpush1.msra.mxu0 0.0
  %175 = vmatprep.subr.mxu0 0.0
  %176 = vmatpush1.msra.mxu0 0.0
  %177 = vmatprep.subr.mxu0 0.0
  %178 = vmatpush1.msra.mxu0 0.0
  %179 = vmatprep.subr.mxu0 0.0
  %180 = vmatpush1.msra.mxu0 0.0
  %181 = vmatprep.subr.mxu0 0.0
  %182 = vmatpush1.msra.mxu0 0.0
  %183 = vmatprep.subr.mxu0 0.0
  %184 = vmatpush1.msra.mxu0 0.0
  %185 = vmatprep.subr.mxu0 0.0
  %186 = vmatpush1.msra.mxu0 0.0
  %187 = vmatprep.subr.mxu0 0.0
  %188 = vmatpush1.msra.mxu0 0.0
  %189 = vmatprep.subr.mxu0 0.0
  %190 = vmatpush1.msra.mxu0 0.0
  %191 = vmatprep.subr.mxu0 0.0
  %192 = vmatpush1.msra.mxu0 0.0
  %193 = vmatprep.subr.mxu0 0.0
  %194 = vmatpush1.msra.mxu0 0.0
  %195 = vmatprep.subr.mxu0 0.0
  %196 = vmatpush1.msra.mxu0 0.0
  %197 = vmatprep.subr.mxu0 0.0
  %198 = vmatpush1.msra.mxu0 0.0
  %199 = vmatprep.subr.mxu0 0.0
  %200 = vmatpush1.msra.mxu0 0.0
  %201 = vmatprep.subr.mxu0 0.0
  %202 = vmatpush1.msra.mxu0 0.0
  %203 = vmatprep.subr.mxu0 0.0
  %204 = vmatpush1.msra.mxu0 0.0
  %205 = vmatprep.subr.mxu0 0.0
  %206 = vmatpush1.msra.mxu0 0.0
  %207 = vmatprep.subr.mxu0 0.0
  %208 = vmatpush1.msra.mxu0 0.0
  %209 = vmatprep.subr.mxu0 0.0
  %210 = vmatpush1.msra.mxu0 0.0
  %211 = vmatprep.subr.mxu0 0.0
  %212 = vmatpush1.msra.mxu0 0.0
  %213 = vmatprep.mubr.f32.mxu0 0.0
  %214 = vmatmul.mubr.f32.gmra.mrb[0].mxu0 %v147
  %v215 = vpop.f32.mrb[0].mxu0
  %v216 = vadd.f32 1e-06, %v215
  %v217 = vpop.f32.mrb[0].mxu0
  %218 = vdwg.mxu0
  %v219 = vmul.f32 %v135, %v145
  %v221 = vsel %vm138, %v219, 0
  %223 = vmatprep.subr.mxu0 0.0
  %224 = vmatpush1.msra.mxu0 1.0
  %225 = vmatprep.subr.mxu0 0.0
  %226 = vmatpush1.msra.mxu0 0.0
  %227 = vmatprep.subr.mxu0 0.0
  %228 = vmatpush1.msra.mxu0 0.0
  %229 = vmatprep.subr.mxu0 0.0
  %230 = vmatpush1.msra.mxu0 0.0
  %231 = vmatprep.subr.mxu0 0.0
  %232 = vmatpush1.msra.mxu0 0.0
  %233 = vmatprep.subr.mxu0 0.0
  %234 = vmatpush1.msra.mxu0 0.0
  %235 = vmatprep.subr.mxu0 0.0
  %236 = vmatpush1.msra.mxu0 0.0
  %237 = vmatprep.subr.mxu0 0.0
  %238 = vmatpush1.msra.mxu0 0.0
  %239 = vmatprep.subr.mxu0 0.0
  %240 = vmatpush1.msra.mxu0 0.0
  %241 = vmatprep.subr.mxu0 0.0
  %242 = vmatpush1.msra.mxu0 0.0
  %243 = vmatprep.subr.mxu0 0.0
  %244 = vmatpush1.msra.mxu0 0.0
  %245 = vmatprep.subr.mxu0 0.0
  %246 = vmatpush1.msra.mxu0 0.0
  %247 = vmatprep.subr.mxu0 0.0
  %248 = vmatpush1.msra.mxu0 0.0
  %249 = vmatprep.subr.mxu0 0.0
  %250 = vmatpush1.msra.mxu0 0.0
  %251 = vmatprep.subr.mxu0 0.0
  %252 = vmatpush1.msra.mxu0 0.0
  %253 = vmatprep.subr.mxu0 0.0
  %254 = vmatpush1.msra.mxu0 0.0
  %255 = vmatprep.subr.mxu0 0.0
  %256 = vmatpush1.msra.mxu0 0.0
  %257 = vmatprep.subr.mxu0 0.0
  %258 = vmatpush1.msra.mxu0 0.0
  %259 = vmatprep.subr.mxu0 0.0
  %260 = vmatpush1.msra.mxu0 0.0
  %261 = vmatprep.subr.mxu0 0.0
  %262 = vmatpush1.msra.mxu0 0.0
  %263 = vmatprep.subr.mxu0 0.0
  %264 = vmatpush1.msra.mxu0 0.0
  %265 = vmatprep.subr.mxu0 0.0
  %266 = vmatpush1.msra.mxu0 0.0
  %267 = vmatprep.subr.mxu0 0.0
  %268 = vmatpush1.msra.mxu0 0.0
  %269 = vmatprep.subr.mxu0 0.0
  %270 = vmatpush1.msra.mxu0 0.0
  %271 = vmatprep.subr.mxu0 0.0
  %272 = vmatpush1.msra.mxu0 0.0
  %273 = vmatprep.subr.mxu0 0.0
  %274 = vmatpush1.msra.mxu0 0.0
  %275 = vmatprep.subr.mxu0 0.0
  %276 = vmatpush1.msra.mxu0 0.0
  %277 = vmatprep.subr.mxu0 0.0
  %278 = vmatpush1.msra.mxu0 0.0
  %279 = vmatprep.subr.mxu0 0.0
  %280 = vmatpush1.msra.mxu0 0.0
  %281 = vmatprep.subr.mxu0 0.0
  %282 = vmatpush1.msra.mxu0 0.0
  %283 = vmatprep.subr.mxu0 0.0
  %284 = vmatpush1.msra.mxu0 0.0
  %285 = vmatprep.subr.mxu0 0.0
  %286 = vmatpush1.msra.mxu0 0.0
  %287 = vmatprep.mubr.f32.mxu0 0.0
  %288 = vmatmul.mubr.f32.gmra.mrb[0].mxu0 %v221
  %v289 = vpop.f32.mrb[0].mxu0
  %v290 = vadd.f32 0.0, %v289
  %v291 = vpop.f32.mrb[0].mxu0
  %292 = vdwg.mxu0
  %v293 = vrcp.pop %v216
  %v294 = vmul.f32 %v290, %v293
  %v295 = vsel %vm138, %v137, inf
  %296 = vmin.xlane.f32.xlu0 %v295
  %v297 = vpop.xlane.xlu0 %296
  %v298 = vsub.f32 %v297, %v137
  %v299 = vmul.f32 %v298, 1.442695
  %v300 = vpow.pop %v299
  %v301 = vsel %vm36, 0.0, %v300
  %v303 = vsel %vm138, %v301, 0
  %305 = vmatprep.subr.mxu0 0.0
  %306 = vmatpush1.msra.mxu0 1.0
  %307 = vmatprep.subr.mxu0 0.0
  %308 = vmatpush1.msra.mxu0 0.0
  %309 = vmatprep.subr.mxu0 0.0
  %310 = vmatpush1.msra.mxu0 0.0
  %311 = vmatprep.subr.mxu0 0.0
  %312 = vmatpush1.msra.mxu0 0.0
  %313 = vmatprep.subr.mxu0 0.0
  %314 = vmatpush1.msra.mxu0 0.0
  %315 = vmatprep.subr.mxu0 0.0
  %316 = vmatpush1.msra.mxu0 0.0
  %317 = vmatprep.subr.mxu0 0.0
  %318 = vmatpush1.msra.mxu0 0.0
  %319 = vmatprep.subr.mxu0 0.0
  %320 = vmatpush1.msra.mxu0 0.0
  %321 = vmatprep.subr.mxu0 0.0
  %322 = vmatpush1.msra.mxu0 0.0
  %323 = vmatprep.subr.mxu0 0.0
  %324 = vmatpush1.msra.mxu0 0.0
  %325 = vmatprep.subr.mxu0 0.0
  %326 = vmatpush1.msra.mxu0 0.0
  %327 = vmatprep.subr.mxu0 0.0
  %328 = vmatpush1.msra.mxu0 0.0
  %329 = vmatprep.subr.mxu0 0.0
  %330 = vmatpush1.msra.mxu0 0.0
  %331 = vmatprep.subr.mxu0 0.0
  %332 = vmatpush1.msra.mxu0 0.0
  %333 = vmatprep.subr.mxu0 0.0
  %334 = vmatpush1.msra.mxu0 0.0
  %335 = vmatprep.subr.mxu0 0.0
  %336 = vmatpush1.msra.mxu0 0.0
  %337 = vmatprep.subr.mxu0 0.0
  %338 = vmatpush1.msra.mxu0 0.0
  %339 = vmatprep.subr.mxu0 0.0
  %340 = vmatpush1.msra.mxu0 0.0
  %341 = vmatprep.subr.mxu0 0.0
  %342 = vmatpush1.msra.mxu0 0.0
  %343 = vmatprep.subr.mxu0 0.0
  %344 = vmatpush1.msra.mxu0 0.0
  %345 = vmatprep.subr.mxu0 0.0
  %346 = vmatpush1.msra.mxu0 0.0
  %347 = vmatprep.subr.mxu0 0.0
  %348 = vmatpush1.msra.mxu0 0.0
  %349 = vmatprep.subr.mxu0 0.0
  %350 = vmatpush1.msra.mxu0 0.0
  %351 = vmatprep.subr.mxu0 0.0
  %352 = vmatpush1.msra.mxu0 0.0
  %353 = vmatprep.subr.mxu0 0.0
  %354 = vmatpush1.msra.mxu0 0.0
  %355 = vmatprep.subr.mxu0 0.0
  %356 = vmatpush1.msra.mxu0 0.0
  %357 = vmatprep.subr.mxu0 0.0
  %358 = vmatpush1.msra.mxu0 0.0
  %359 = vmatprep.subr.mxu0 0.0
  %360 = vmatpush1.msra.mxu0 0.0
  %361 = vmatprep.subr.mxu0 0.0
  %362 = vmatpush1.msra.mxu0 0.0
  %363 = vmatprep.subr.mxu0 0.0
  %364 = vmatpush1.msra.mxu0 0.0
  %365 = vmatprep.subr.mxu0 0.0
  %366 = vmatpush1.msra.mxu0 0.0
  %367 = vmatprep.subr.mxu0 0.0
  %368 = vmatpush1.msra.mxu0 0.0
  %369 = vmatprep.mubr.f32.mxu0 0.0
  %370 = vmatmul.mubr.f32.gmra.mrb[0].mxu0 %v303
  %v371 = vpop.f32.mrb[0].mxu0
  %v372 = vadd.f32 1e-06, %v371
  %v373 = vpop.f32.mrb[0].mxu0
  %374 = vdwg.mxu0
  %v375 = vmul.f32 %v135, %v301
  %v377 = vsel %vm138, %v375, 0
  %379 = vmatprep.subr.mxu0 0.0
  %380 = vmatpush1.msra.mxu0 1.0
  %381 = vmatprep.subr.mxu0 0.0
  %382 = vmatpush1.msra.mxu0 0.0
  %383 = vmatprep.subr.mxu0 0.0
  %384 = vmatpush1.msra.mxu0 0.0
  %385 = vmatprep.subr.mxu0 0.0
  %386 = vmatpush1.msra.mxu0 0.0
  %387 = vmatprep.subr.mxu0 0.0
  %388 = vmatpush1.msra.mxu0 0.0
  %389 = vmatprep.subr.mxu0 0.0
  %390 = vmatpush1.msra.mxu0 0.0
  %391 = vmatprep.subr.mxu0 0.0
  %392 = vmatpush1.msra.mxu0 0.0
  %393 = vmatprep.subr.mxu0 0.0
  %394 = vmatpush1.msra.mxu0 0.0
  %395 = vmatprep.subr.mxu0 0.0
  %396 = vmatpush1.msra.mxu0 0.0
  %397 = vmatprep.subr.mxu0 0.0
  %398 = vmatpush1.msra.mxu0 0.0
  %399 = vmatprep.subr.mxu0 0.0
  %400 = vmatpush1.msra.mxu0 0.0
  %401 = vmatprep.subr.mxu0 0.0
  %402 = vmatpush1.msra.mxu0 0.0
  %403 = vmatprep.subr.mxu0 0.0
  %404 = vmatpush1.msra.mxu0 0.0
  %405 = vmatprep.subr.mxu0 0.0
  %406 = vmatpush1.msra.mxu0 0.0
  %407 = vmatprep.subr.mxu0 0.0
  %408 = vmatpush1.msra.mxu0 0.0
  %409 = vmatprep.subr.mxu0 0.0
  %410 = vmatpush1.msra.mxu0 0.0
  %411 = vmatprep.subr.mxu0 0.0
  %412 = vmatpush1.msra.mxu0 0.0
  %413 = vmatprep.subr.mxu0 0.0
  %414 = vmatpush1.msra.mxu0 0.0
  %415 = vmatprep.subr.mxu0 0.0
  %416 = vmatpush1.msra.mxu0 0.0
  %417 = vmatprep.subr.mxu0 0.0
  %418 = vmatpush1.msra.mxu0 0.0
  %419 = vmatprep.subr.mxu0 0.0
  %420 = vmatpush1.msra.mxu0 0.0
  %421 = vmatprep.subr.mxu0 0.0
  %422 = vmatpush1.msra.mxu0 0.0
  %423 = vmatprep.subr.mxu0 0.0
  %424 = vmatpush1.msra.mxu0 0.0
  %425 = vmatprep.subr.mxu0 0.0
  %426 = vmatpush1.msra.mxu0 0.0
  %427 = vmatprep.subr.mxu0 0.0
  %428 = vmatpush1.msra.mxu0 0.0
  %429 = vmatprep.subr.mxu0 0.0
  %430 = vmatpush1.msra.mxu0 0.0
  %431 = vmatprep.subr.mxu0 0.0
  %432 = vmatpush1.msra.mxu0 0.0
  %433 = vmatprep.subr.mxu0 0.0
  %434 = vmatpush1.msra.mxu0 0.0
  %435 = vmatprep.subr.mxu0 0.0
  %436 = vmatpush1.msra.mxu0 0.0
  %437 = vmatprep.subr.mxu0 0.0
  %438 = vmatpush1.msra.mxu0 0.0
  %439 = vmatprep.subr.mxu0 0.0
  %440 = vmatpush1.msra.mxu0 0.0
  %441 = vmatprep.subr.mxu0 0.0
  %442 = vmatpush1.msra.mxu0 0.0
  %443 = vmatprep.mubr.f32.mxu0 0.0
  %444 = vmatmul.mubr.f32.gmra.mrb[0].mxu0 %v377
  %v445 = vpop.f32.mrb[0].mxu0
  %v446 = vadd.f32 0.0, %v445
  %v447 = vpop.f32.mrb[0].mxu0
  %448 = vdwg.mxu0
  %v449 = vrcp.pop %v372
  %v450 = vmul.f32 %v446, %v449
  %v451 = vsub.f32 %v450, %v294
  %v452 = vsub.f32 0.0, %v451
  %v453 = vmax.f32 %v452, 0.0
  %v454 = vand.u32 2147483647, %v451
  %v455 = vsub.f32 0.0, %v454
  %v456 = vmul.f32 %v455, 1.442695
  %v457 = vpow.pop %v456
  %v458 = vadd.f32 %v457, 1.0
  %v459 = vlog2.pop %v458
  %v460 = vmul.f32 %v459, 0.6931472
  %v461 = vmul.f32 -0.5, %v457
  %v462 = vadd.f32 %v461, 1.0
  %v463 = vmul.f32 %v462, %v457
  %v464 = vand.u32 2147483647, %v457
  %vm465 = vcmp.lt.f32.partialorder %v464, 0.0004427343
  %v466 = vsel %vm465, %v463, %v460
  %v467 = vadd.f32 %v453, %v466
  %vm468 = vcmask 7168
  %469 = vst.msk [vmem:[%s6] sm:$0xff] %vm468, %v467
  // Predicated region
  $region26: #{tpu_custom_call.1} parent=0 // pred_check
    _
  $region27: #{tpu_custom_call.1} parent=0 // pred_check_branch
    %471 = sbr.rel (0) target = $region29
  $region28: #{tpu_custom_call.1} parent=0 // pred_region
    _
  $region29: #{tpu_custom_call.1} parent=0 // pred_fallthru
    _
  // Predicated region
  $region30: #{tpu_custom_call.1} parent=0 // pred_check
    _
  $region31: #{tpu_custom_call.1} parent=0 // pred_check_branch
    %473 = sbr.rel (0) target = $region33
  $region32: #{tpu_custom_call.1} parent=0 // pred_region
    _
  $region33: #{tpu_custom_call.1} parent=0 // pred_fallthru
    _

</llo_original>
